<compile_context>
chip_gen: v7x
topology: tpu7x:2x2x1
jax: 0.10.0
libtpu: 0.0.40
codegen_flags: <defaults>
</compile_context>

<pallas_src>
import jax
import jax.numpy as jnp
from jax.experimental import pallas as pl
from jax.experimental.pallas import tpu as pltpu


def _round_up(n, m):
    return ((n + m - 1) // m) * m


def _tile_lanes(v, reps):
    """Repeat a (Bt, C) value `reps` times along the lane axis -> (Bt, reps*C).

    Log-doubling lane concatenation: ceil(log2(reps)) concats instead of
    `reps` narrow masked stores or a tile->reshape relayout.
    """
    if reps <= 1:
        return v
    c = v.shape[1]
    out = v
    have = 1
    while have < reps:
        take = min(have, reps - have)
        out = jnp.concatenate([out, out[:, : take * c]], axis=1)
        have += take
    return out


def _make_kernel(L, C, K, pad, L_dense, zguard, use_scan):
    inv_k = 1.0 / float(K)
    L_pad = L + 2 * pad
    base = zguard                    # lane offset of padded-sequence time step 0
    front = zguard + pad * C         # 128-aligned lane offset where x lands
    W = front + (L + pad) * C        # total scratch lanes

    def kernel(x_ref, o_ref, xp_ref):
        # x_ref : (Bt, L*C)        input tile (time x channels, lane-flattened)
        # o_ref : (Bt, L_dense*C)  dense (stride=1) moving-average tile
        # xp_ref: (Bt, W) f32      scratch: [zero guard | front pad | x | end pad]
        bt = x_ref.shape[0]
        xv = x_ref[...].astype(jnp.float32)          # widening read, exactly once

        if use_scan:
            # Zero guard so the prefix-sum "exclusive" lookback reads zeros.
            xp_ref[:, 0:zguard] = jnp.zeros((bt, zguard), jnp.float32)
        if pad > 0:
            first = xv[:, 0:C]
            last = xv[:, (L - 1) * C:L * C]
            # Replicate padding as two wide stores (not 2*pad masked C-wide ones).
            xp_ref[:, base:base + pad * C] = _tile_lanes(first, pad)
            xp_ref[:, front + L * C:W] = _tile_lanes(last, pad)
        # Interior copy lands at a 128-aligned lane offset -> unmasked bulk vst.
        xp_ref[:, front:front + L * C] = xv

        if use_scan:
            # Hillis-Steele inclusive prefix sum over time (lane shifts of d*C):
            # ~ceil(log2(L_pad)) shifted adds instead of K-1 tap adds.
            d = 1
            while d < L_pad:
                dC = d * C
                hi_v = xp_ref[:, dC:W]
                lo_v = xp_ref[:, 0:W - dC]
                xp_ref[:, dC:W] = hi_v + lo_v
                d *= 2
            # window mean = (S[t+K-1] - S[t-1]) / K ; t = -1 lands in the guard.
            hi = xp_ref[:, base + (K - 1) * C: base + (K - 1) * C + L_dense * C]
            lo = xp_ref[:, base - C: base - C + L_dense * C]
            o_ref[...] = ((hi - lo) * inv_k).astype(o_ref.dtype)
        else:
            # Small-K tap unroll, split into two accumulators to break the
            # serial f32 dependence chain (fills vld/VALU slots better).
            def tap(k):
                off = base + k * C
                return xp_ref[:, off: off + L_dense * C]

            acc0 = tap(0)
            if K > 1:
                acc1 = tap(1)
                for k in range(2, K, 2):
                    acc0 = acc0 + tap(k)
                for k in range(3, K, 2):
                    acc1 = acc1 + tap(k)
                acc0 = acc0 + acc1
            o_ref[...] = (acc0 * inv_k).astype(o_ref.dtype)

    return kernel


def _vmem_capacity_bytes():
    """Physical VMEM capacity for the local chip (conservative default: v7x)."""
    try:
        info = pltpu.get_tpu_info()
        cap = getattr(info, "vmem_capacity_bytes", None)
        if cap:
            return int(cap)
    except Exception:
        pass
    return 64 << 20


def _pick_batch_tile(B, bytes_per_row, budget, min_steps, sublane_mult):
    """Largest batch tile that divides B, respects the dtype sublane multiple
    (or is the full batch), fits the VMEM budget and, when possible, leaves
    >= min_steps grid steps (>= 2 per v7x TensorCore) with tiles >= ~1 MiB."""
    divs = [d for d in range(1, B + 1) if B % d == 0]
    aligned = [d for d in divs if d % sublane_mult == 0 or d == B]
    fitting = [d for d in aligned if d * bytes_per_row <= budget]
    if not fitting:
        # Nothing fits the budget: take the smallest legal tile; the caller
        # raises vmem_limit_bytes to cover whatever is returned here.
        return min(aligned)
    preferred = [d for d in fitting
                 if B // d >= min_steps and d * bytes_per_row >= (1 << 20)]
    if preferred:
        return max(preferred)
    multi = [d for d in fitting if B // d >= 2]
    return max(multi) if multi else max(fitting)


def moving_avg_pallas(x, kernel_size: int, stride: int):
    """Moving average over the time axis: x (B, L, C) -> (B, L_out, C)."""
    B, L, C = x.shape
    K = int(kernel_size)
    stride = int(stride)
    pad = (K - 1) // 2
    L_pad = L + 2 * pad
    L_dense = L_pad - K + 1                       # stride-1 output length
    L_out = (L_pad - K) // stride + 1
    use_scan = (K > 8) and (pad > 0)              # prefix-sum path for large K

    # Scratch layout: front region rounded up to a 128-lane boundary so the
    # interior copy is aligned; the slack doubles as the scan's zero guard.
    front = _round_up(pad * C + C, 128)
    zguard = front - pad * C                      # >= C by construction
    W = front + (L + pad) * C

    itemsize = jnp.dtype(x.dtype).itemsize
    sublane_mult = max(8, 32 // max(itemsize, 1))  # 8 f32 / 16 bf16 / 32 int8

    def lane_pad(n):
        return _round_up(n, 128)

    # Per-batch-row VMEM: double-buffered in/out blocks + f32 scratch.
    bytes_per_row = (2 * lane_pad(L * C) + 2 * lane_pad(L_dense * C)) * itemsize \
        + lane_pad(W) * 4

    cap = _vmem_capacity_bytes()
    if cap >= (100 << 20):            # v5e / v6e: 128 MiB physical VMEM, 1 TC
        budget, limit_ceiling, min_steps = 24 << 20, 96 << 20, 2
    else:                             # v7x: 64 MiB VMEM, 2 TCs share the grid
        budget, limit_ceiling, min_steps = 8 << 20, 48 << 20, 4

    Bt = _pick_batch_tile(B, bytes_per_row, budget, min_steps, sublane_mult)
    grid = (B // Bt,)

    vmem_needed = Bt * bytes_per_row + (2 << 20)
    vmem_limit = min(max(2 * vmem_needed, 32 << 20), limit_ceiling)
    vmem_limit = max(vmem_limit, vmem_needed)     # never below what the tile needs
    vmem_limit = int(min(vmem_limit, cap))        # never above physical capacity

    x_flat = x.reshape(B, L * C)                  # layout-preserving: free

    dense = pl.pallas_call(
        _make_kernel(L, C, K, pad, L_dense, zguard, use_scan),
        out_shape=jax.ShapeDtypeStruct((B, L_dense * C), x.dtype),
        grid=grid,
        in_specs=[pl.BlockSpec((Bt, L * C), lambda b: (b, 0))],
        out_specs=pl.BlockSpec((Bt, L_dense * C), lambda b: (b, 0)),
        scratch_shapes=[pltpu.VMEM((Bt, W), jnp.float32)],
        compiler_params=pltpu.CompilerParams(
            dimension_semantics=("parallel",),
            vmem_limit_bytes=vmem_limit,
        ),
    )(x_flat)

    dense = dense.reshape(B, L_dense, C)          # layout-preserving: free
    if stride == 1:
        return dense
    # stride > 1 (unused by Autoformer): subsample the dense averages.
    # TODO(synk): write only every stride-th window in-kernel to cut HBM writes.
    return dense[:, ::stride, :][:, :L_out, :]


def moving_avg_ref(x, kernel_size: int, stride: int):
    """Pure-JAX reference matching the PyTorch module."""
    pad = (kernel_size - 1) // 2
    front = jnp.repeat(x[:, 0:1, :], pad, axis=1)
    end = jnp.repeat(x[:, -1:, :], pad, axis=1)
    xp = jnp.concatenate([front, x, end], axis=1)
    L_pad = xp.shape[1]
    L_out = (L_pad - kernel_size) // stride + 1
    wins = jnp.stack(
        [xp[:, t * stride: t * stride + kernel_size, :] for t in range(L_out)],
        axis=1,
    )  # (B, L_out, K, C)
    return jnp.mean(wins, axis=2).astype(x.dtype)


if __name__ == "__main__":
    key = jax.random.PRNGKey(0)
    configs = [
        # (B, L, C, kernel_size, stride)
        (2, 16, 8, 5, 1),    # small K -> two-accumulator tap unroll
        (2, 32, 8, 25, 1),   # Autoformer-style K=25 -> prefix-sum path
        (4, 96, 7, 25, 1),   # ETT-like channel count (C=7), K=25
        (2, 16, 8, 5, 2),    # strided pooling via dense + subsample
    ]
    for i, (B, L, C, K, S) in enumerate(configs):
        x = jax.random.normal(jax.random.fold_in(key, i), (B, L, C),
                              dtype=jnp.float32)
        out = jax.block_until_ready(moving_avg_pallas(x, K, S))
        ref = moving_avg_ref(x, K, S)
        assert out.shape == ref.shape, (out.shape, ref.shape)
        assert jnp.allclose(out, ref, atol=1e-5, rtol=1e-5), (B, L, C, K, S)
    print("KERNEL_OK")
</pallas_src>

<mosaic_0001>
module attributes {stable_mosaic.version = 11 : i64} {
  func.func @kernel(%arg0: i32, %arg1: memref<2x128xf32, #tpu.memory_space<vmem>>, %arg2: memref<2x128xf32, #tpu.memory_space<vmem>>, %arg3: memref<2x272xf32, #tpu.memory_space<vmem>>) attributes {dimension_semantics = [#tpu.dimension_semantics<parallel>], iteration_bounds = array<i64: 1>, scalar_prefetch = 0 : i64, scratch_operands = 1 : i64, tpu.core_type = #tpu.core_type<tc>, window_params = [{transform_indices = @transform_0, window_bounds = array<i64: 2, 128>}, {transform_indices = @transform_1, window_bounds = array<i64: 2, 128>}]} {
    %c0 = arith.constant 0 : index
    %c0_0 = arith.constant 0 : index
    %0 = vector.load %arg1[%c0, %c0_0] : memref<2x128xf32, #tpu.memory_space<vmem>>, vector<2x128xf32>
    %1 = vector.extract_strided_slice %0 {offsets = [0, 0], sizes = [2, 8], strides = [1, 1]} : vector<2x128xf32> to vector<2x8xf32>
    %2 = vector.extract_strided_slice %0 {offsets = [0, 120], sizes = [2, 8], strides = [1, 1]} : vector<2x128xf32> to vector<2x8xf32>
    %3 = tpu.concatenate %1, %1 in 1 : vector<2x8xf32>, vector<2x8xf32> -> vector<2x16xf32>
    %c0_1 = arith.constant 0 : index
    %c112 = arith.constant 112 : index
    %4 = vector.load %arg3[%c0_1, %c112] : memref<2x272xf32, #tpu.memory_space<vmem>>, vector<2x16xf32>
    tpu.vector_store %arg3[%c0_1, %c112], %3 {strides = array<i32>} : memref<2x272xf32, #tpu.memory_space<vmem>>, vector<2x16xf32>,
    %5 = tpu.concatenate %2, %2 in 1 : vector<2x8xf32>, vector<2x8xf32> -> vector<2x16xf32>
    %c0_2 = arith.constant 0 : index
    %c256 = arith.constant 256 : index
    %6 = vector.load %arg3[%c0_2, %c256] : memref<2x272xf32, #tpu.memory_space<vmem>>, vector<2x16xf32>
    tpu.vector_store %arg3[%c0_2, %c256], %5 {strides = array<i32>} : memref<2x272xf32, #tpu.memory_space<vmem>>, vector<2x16xf32>,
    %c0_3 = arith.constant 0 : index
    %c128 = arith.constant 128 : index
    %7 = vector.load %arg3[%c0_3, %c128] : memref<2x272xf32, #tpu.memory_space<vmem>>, vector<2x128xf32>
    tpu.vector_store %arg3[%c0_3, %c128], %0 {strides = array<i32>} : memref<2x272xf32, #tpu.memory_space<vmem>>, vector<2x128xf32>,
    %c0_4 = arith.constant 0 : index
    %c112_5 = arith.constant 112 : index
    %8 = vector.load %arg3[%c0_4, %c112_5] : memref<2x272xf32, #tpu.memory_space<vmem>>, vector<2x128xf32>
    %c0_6 = arith.constant 0 : index
    %c120 = arith.constant 120 : index
    %9 = vector.load %arg3[%c0_6, %c120] : memref<2x272xf32, #tpu.memory_space<vmem>>, vector<2x128xf32>
    %c0_7 = arith.constant 0 : index
    %c128_8 = arith.constant 128 : index
    %10 = vector.load %arg3[%c0_7, %c128_8] : memref<2x272xf32, #tpu.memory_space<vmem>>, vector<2x128xf32>
    %11 = arith.addf %8, %10 : vector<2x128xf32>
    %c0_9 = arith.constant 0 : index
    %c144 = arith.constant 144 : index
    %12 = vector.load %arg3[%c0_9, %c144] : memref<2x272xf32, #tpu.memory_space<vmem>>, vector<2x128xf32>
    %13 = arith.addf %11, %12 : vector<2x128xf32>
    %c0_10 = arith.constant 0 : index
    %c136 = arith.constant 136 : index
    %14 = vector.load %arg3[%c0_10, %c136] : memref<2x272xf32, #tpu.memory_space<vmem>>, vector<2x128xf32>
    %15 = arith.addf %9, %14 : vector<2x128xf32>
    %16 = arith.addf %13, %15 : vector<2x128xf32>
    %cst = arith.constant 2.000000e-01 : f32
    %17 = vector.broadcast %cst : f32 to vector<2x128xf32>
    %18 = arith.mulf %16, %17 : vector<2x128xf32>
    %c0_11 = arith.constant 0 : index
    %c0_12 = arith.constant 0 : index
    %19 = vector.load %arg2[%c0_11, %c0_12] : memref<2x128xf32, #tpu.memory_space<vmem>>, vector<2x128xf32>
    tpu.vector_store %arg2[%c0_11, %c0_12], %18 {strides = array<i32>} : memref<2x128xf32, #tpu.memory_space<vmem>>, vector<2x128xf32>,
    return
  }
  func.func @transform_0(%arg0: i32) -> (i32, i32) {
    %c0_i32 = arith.constant 0 : i32
    %c0_i32_0 = arith.constant 0 : i32
    return %arg0, %c0_i32 : i32, i32
  }
  func.func @transform_1(%arg0: i32) -> (i32, i32) {
    %c0_i32 = arith.constant 0 : i32
    %c0_i32_0 = arith.constant 0 : i32
    return %arg0, %c0_i32 : i32, i32
  }
}

</mosaic_0001>

<llo_original>
// kernel: tpu_custom_call.1
$region0: #{tpu_custom_call.1}
  #allocation0 [shape = 'u32[]', space=smem, size = 0x4, offset = 0x4, fixed_abs, tag = 'smem constant byte address 0x4 - core index']
  #allocation1 [shape = 'u32[144,128]{1,0:T(1,128)}', space=vmem, size = 0x12000, scoped, tag = 'internal scratch']
  #allocation2 [shape = 'f32[2,272]{1,0:T(2,128)}', space=vmem, size = 0xc00, scoped, tag = 'scratch operand']
  %s0 = inlined_call_operand.hbm [shape: f32[2,128], index: 0, kind: input, shape index: {}]
  %s1 = inlined_call_operand.hbm [shape: f32[2,128], index: 1, kind: output, shape index: {}]
  %s2 = sld [smem:[#allocation0]]
  $region18: #{tpu_custom_call.1} parent=0
    _
  %s4 = ssub.s32 1, %s2
  %s5 = scalar_select 0, %s4, %s2
  $region1: #{tpu_custom_call.1} parent=0
    #allocation3 [shape = 'u8[1024]{0}', space=vmem, size = 0x400, scoped, tag = 'input window, operand 0, single buffered']
    #allocation4 [shape = 's32[1]{0}', space=sflag, size = 0x4, scoped, tag = 'scoped memory for tpu_custom_call.1']
    #allocation5 [shape = 's32[1]{0}', space=sflag, size = 0x4, scoped, tag = 'scoped memory for tpu_custom_call.1']
    #allocation6 [shape = 'u8[1024]{0}', space=vmem, size = 0x400, scoped, tag = 'output window, operand 0, single buffered']
    %6 = vsyncpa [#allocation4], 0
    %7 = vsyncpa [#allocation5], 0
    // Predicated region
    $region2: #{tpu_custom_call.1} parent=1 // pred_check
      _
    $region3: #{tpu_custom_call.1} parent=1 // pred_check_branch
      %9 = sbr.rel (0) target = $region5
    $region4: #{tpu_custom_call.1} parent=1 // pred_region
      %s11 = ssub.s32 32, 32
      %12 = vsyncadd [#allocation4], %s11
      %s14 = sshll.u32 [#allocation3], 4
      %s15 = int_to_ptr.vmem [resolvable:$true] %s14
      %17 = dma.hbm_to_vmem [thread:$0]  %s0, 32, %s15, [#allocation4]
    $region5: #{tpu_custom_call.1} parent=1 // pred_fallthru
      _
    // Predicated region
    $region6: #{tpu_custom_call.1} parent=1 // pred_check
      _
    $region7: #{tpu_custom_call.1} parent=1 // pred_check_branch
      %19 = sbr.rel (0) target = $region9
    $region8: #{tpu_custom_call.1} parent=1 // pred_region
      %20 = dma.done [#allocation4], 32
    $region9: #{tpu_custom_call.1} parent=1 // pred_fallthru
      _
    %v21 = vld [vmem:[#allocation3] sm:$0x3]
    %23 = vrot.lane.b32.xlu0 %v21, 8
    %v24 = vpop.permute.xlu0 %23
    %vm26 = vcmask 64512
    %v27 = vsel %vm26, %v21, %v24
    %v30 = vunpack.c.l.s4 1983009808
    %v31 = vunpack.c.0.s8 %v30
    %v32 = vlaneseq
    %v33 = vshrl.u32 %v32, 7
    %v34 = vsub.s32 %v31, %v33
    %v35 = vrot.slane %v27, %v34
    %36 = vrot.lane.b32.xlu0 %v35, 112
    %v37 = vpop.permute.xlu0 %36
    %vm39 = vcmask 1042304
    %40 = vst.msk [vmem:[#allocation2] sm:$0x3] %vm39, %v37
    %41 = vrot.lane.b32.xlu0 %v21, 16
    %v42 = vpop.permute.xlu0 %41
    %v44 = vsel %vm26, %v24, %v42
    %vm45 = vcmask 123904
    %46 = vst.msk [vmem:[#allocation2 + $0x4] sm:$0x3] %vm45, %v44
    %47 = vst [vmem:[#allocation2 + $0x2] sm:$0x3] %v21
    %v48 = vld [vmem:[#allocation2] sm:$0xf]
    %v49 = vld [vmem:[#allocation2 + $0x2] sm:$0x3]
    %51 = vrot.lane.b32.xlu0 %v49, 112
    %v52 = vpop.permute.xlu0 %51
    %v53 = vrot.slane %v52, 6
    %vm54 = vcmask 916480
    %v55 = vsel %vm54, %v53, %v52
    %v57 = vadd.f32 %v48, %v55
    %v58 = vld [vmem:[#allocation2 + $0x2] sm:$0xf]
    %60 = vrot.lane.b32.xlu0 %v58, 96
    %v61 = vpop.permute.xlu0 %60
    %v62 = vrot.slane %v61, 6
    %vm63 = vcmask 785408
    %v64 = vsel %vm63, %v62, %v61
    %v66 = vadd.f32 %v57, %v64
    %67 = vrot.lane.b32.xlu0 %v58, 112
    %v68 = vpop.permute.xlu0 %67
    %v69 = vrot.slane %v68, 6
    %v70 = vsel %vm54, %v69, %v68
    %v72 = vadd.f32 %v48, %v70
    %74 = vrot.lane.b32.xlu0 %v72, 120
    %v75 = vpop.permute.xlu0 %74
    %v76 = vrot.slane %v75, 2
    %vm77 = vcmask 982016
    %v78 = vsel %vm77, %v75, %v76
    %v80 = vadd.f32 %v66, %v78
    %v81 = vmul.f32 %v80, 0.2
    %v84 = vunpack.c.l.s4 1983009808
    %v85 = vunpack.c.0.s8 %v84
    %v86 = vlaneseq
    %v87 = vshrl.u32 %v86, 7
    %v88 = vsub.s32 %v85, %v87
    %v89 = vrot.slane %v81, %v88
    %v90 = vcombine.high %v89, %v89
    %91 = vrot.lane.b32.xlu0 %v89, 16
    %v92 = vpop.permute.xlu0 %91
    %93 = vrot.lane.b32.xlu0 %v90, 16
    %v94 = vpop.permute.xlu0 %93
    %vm95 = vcmask 130048
    %v96 = vsel %vm95, %v92, %v94
    %98 = vst [vmem:[#allocation6] sm:$0x3] %v96
    // Predicated region
    $region10: #{tpu_custom_call.1} parent=1 // pred_check
      _
    $region11: #{tpu_custom_call.1} parent=1 // pred_check_branch
      %100 = sbr.rel (0) target = $region13
    $region12: #{tpu_custom_call.1} parent=1 // pred_region
      %s102 = ssub.s32 32, 32
      %103 = vsyncadd [#allocation5], %s102
      %s105 = sshll.u32 [#allocation6], 4
      %s106 = int_to_ptr.vmem [resolvable:$true] %s105
      %108 = dma.vmem_to_hbm [thread:$0]  %s106, 32, %s1, [#allocation5]
    $region13: #{tpu_custom_call.1} parent=1 // pred_fallthru
      _
    // Predicated region
    $region14: #{tpu_custom_call.1} parent=1 // pred_check
      _
    $region15: #{tpu_custom_call.1} parent=1 // pred_check_branch
      %110 = sbr.rel (0) target = $region17
    $region16: #{tpu_custom_call.1} parent=1 // pred_region
      %111 = dma.done [#allocation5], 32
    $region17: #{tpu_custom_call.1} parent=1 // pred_fallthru
      _
    %112 = vsyncpa [#allocation4], 1
    %113 = vsyncpa [#allocation5], 1

</llo_original>
